<compile_context>
chip_gen: v6e
topology: v6e:2x2x1
jax: 0.10.0
libtpu: 0.0.40
codegen_flags: <defaults>
</compile_context>

<pallas_src>
import functools
import math

import jax
import jax.numpy as jnp
from jax.experimental import pallas as pl
from jax.experimental.pallas import tpu as pltpu


def _relu_kernel(x_ref, o_ref):
    # Pure VPU elementwise max(x, 0) on the whole VMEM tile.  The body is far
    # from binding any VLIW slot; this kernel is DMA/HBM bound on every chip,
    # so no in-kernel micro-optimization is warranted.
    o_ref[...] = jnp.maximum(x_ref[...], jnp.zeros((), x_ref.dtype))


def _chip_tuning():
    """(target_tile_bytes, tensorcores_per_chip) for the local TPU generation."""
    kind = ""
    try:
        kind = (jax.devices()[0].device_kind or "").lower()
    except Exception:
        pass
    if "v7" in kind:
        # 3.2 TB/s HBM: bigger tiles to amortize ~0.35 us per-grid-step
        # overhead; 6 MiB * 2 operands * 2 buffers = 24 MiB < 32 MiB default
        # scoped-VMEM limit.
        return 6 * 1024 * 1024, 2
    if "v6" in kind:
        return 4 * 1024 * 1024, 1       # 16 MiB footprint < 32 MiB default
    if "v5p" in kind or "v4" in kind:
        return 2 * 1024 * 1024, 2       # megacore generations, stay conservative
    if "v5" in kind:
        return 2 * 1024 * 1024, 1       # v5e: 8 MiB footprint < 16 MiB default
    return 2 * 1024 * 1024, 1           # unknown / interpret: be conservative


def _relu_impl(x, *, alias_in_out):
    orig_shape = x.shape
    total = math.prod(orig_shape) if orig_shape else 1
    if total == 0 or x.ndim == 0:
        # Nothing for a kernel to do (empty tensor / scalar).
        return jnp.maximum(x, jnp.zeros((), x.dtype))

    itemsize = jnp.dtype(x.dtype).itemsize
    target_bytes, num_tc = _chip_tuning()

    # Canonical 3-D view (B, S, L): only leading dims are collapsed / added,
    # the minor-most two dims are left untouched, so this reshape is a bitcast
    # (no HBM relayout copy) under the standard TPU tiled layout.
    if x.ndim == 1:
        b, s, l = 1, 1, orig_shape[0]
    elif x.ndim == 2:
        b, s, l = 1, orig_shape[0], orig_shape[1]
    else:
        b, s, l = math.prod(orig_shape[:-2]), orig_shape[-2], orig_shape[-1]
    x3 = x.reshape(b, s, l)

    # Sublane multiple for the second-to-last block dim when it is tiled:
    # 8 for f32, 16 for bf16/f16, 32 for int8/fp8 (packed sublanes).
    sub = 8 * max(1, 4 // itemsize)

    row_bytes = s * l * itemsize  # one leading-index slab, kept full-extent when it fits
    if row_bytes <= target_bytes:
        # Tile the collapsed leading dim; (S, L) stay full extent (exempt from
        # the (8,128) divisibility rule, and lane layout matches the input's).
        tb = max(1, min(b, target_bytes // max(1, row_bytes)))
        ts = s
    else:
        # A single slab exceeds the tile budget: tile the sublane dim instead.
        # TODO(synk): arrays with a single gigantic last dim (L*itemsize*8 >
        # VMEM budget) are not further tiled along L here.
        tb = 1
        ts = max(sub, (target_bytes // max(1, l * itemsize)) // sub * sub)
        ts = min(ts, s)

    steps_b = pl.cdiv(b, tb)
    steps_s = pl.cdiv(s, ts)

    if num_tc > 1 and steps_s == 1 and b > 1:
        # Balance the leading-dim grid across the chip's TensorCores: round the
        # step count up to a multiple of num_tc so neither core sits idle or
        # owns a heavily ragged tail block.  (Skipped on single-TC chips where
        # the grid is a serial loop and extra steps are pure overhead.)
        want = max(num_tc, ((steps_b + num_tc - 1) // num_tc) * num_tc)
        cand_tb = max(1, pl.cdiv(b, want))
        if pl.cdiv(b, cand_tb) % num_tc == 0:
            tb = cand_tb
            steps_b = pl.cdiv(b, tb)

    kwargs = {}
    if alias_in_out:
        # Mirror PyTorch inplace=True: reuse the (donated) input buffer as the
        # output, halving peak HBM footprint for large activations.
        kwargs["input_output_aliases"] = {0: 0}

    out3 = pl.pallas_call(
        _relu_kernel,
        out_shape=jax.ShapeDtypeStruct((b, s, l), x.dtype),
        grid_spec=pltpu.PrefetchScalarGridSpec(
            num_scalar_prefetch=0,
            grid=(steps_b, steps_s),
            in_specs=[pl.BlockSpec((tb, ts, l), lambda i, j: (i, j, 0))],
            out_specs=pl.BlockSpec((tb, ts, l), lambda i, j: (i, j, 0)),
        ),
        compiler_params=pltpu.CompilerParams(
            dimension_semantics=("parallel", "parallel"),
        ),
        cost_estimate=pl.CostEstimate(
            flops=total,
            transcendentals=0,
            bytes_accessed=2 * total * itemsize,
        ),
        **kwargs,
    )(x3)

    return out3.reshape(orig_shape)


# Out-of-place: fresh output buffer, caller's input stays valid.
relu = jax.jit(functools.partial(_relu_impl, alias_in_out=False))

# In-place-style (PyTorch inplace=True): donate the input at the jit boundary
# and alias it to the pallas output.  The caller's array is consumed — any use
# of it after the call raises, like any donated JAX buffer.
relu_inplace = jax.jit(
    functools.partial(_relu_impl, alias_in_out=True), donate_argnums=0
)


class ReLUModule:
    """Mirror of the PyTorch ReLU module (in_channel is unused, as in the ref)."""

    def __init__(self, in_channel: int, inplace: bool = True):
        self.in_channel = in_channel  # no parameters
        self.inplace = inplace        # matches nn.ReLU(inplace=True) in the spec

    def __call__(self, x: jax.Array) -> jax.Array:
        return relu_inplace(x) if self.inplace else relu(x)


if __name__ == "__main__":
    key = jax.random.PRNGKey(0)
    # NCHW input, small shape consistent with a conv-style feature map.
    x = jax.random.normal(key, (2, 4, 16, 16), dtype=jnp.float32)

    # Compute the reference (and stash metadata) BEFORE the in-place call,
    # since the module donates/consumes its input like torch's inplace=True.
    ref = jax.block_until_ready(jnp.maximum(x, 0.0))
    expected_shape, expected_dtype = x.shape, x.dtype

    mod = ReLUModule(in_channel=4)          # inplace=True, as in the PyTorch spec
    y = jax.block_until_ready(mod(x))       # x is consumed here

    assert y.shape == expected_shape and y.dtype == expected_dtype
    assert bool(jnp.allclose(y, ref)), "mismatch vs reference ReLU"

    # Also exercise the out-of-place path once for good measure.
    key2 = jax.random.PRNGKey(0)
    x2 = jax.random.normal(key2, (2, 4, 16, 16), dtype=jnp.float32)
    y2 = jax.block_until_ready(ReLUModule(4, inplace=False)(x2))
    assert bool(jnp.allclose(y2, jnp.maximum(x2, 0.0))), "out-of-place mismatch"

    print("KERNEL_OK")
</pallas_src>

<mosaic_0001>
module attributes {stable_mosaic.version = 11 : i64} {
  func.func @_relu_kernel(%arg0: i32, %arg1: i32, %arg2: memref<8x16x16xf32, #tpu.memory_space<vmem>>, %arg3: memref<8x16x16xf32, #tpu.memory_space<vmem>>) attributes {dimension_semantics = [#tpu.dimension_semantics<parallel>, #tpu.dimension_semantics<parallel>], iteration_bounds = array<i64: 1, 1>, scalar_prefetch = 0 : i64, scratch_operands = 0 : i64, tpu.core_type = #tpu.core_type<tc>, window_params = [{transform_indices = @transform_0, window_bounds = array<i64: 8, 16, 16>}, {transform_indices = @transform_1, window_bounds = array<i64: 8, 16, 16>}]} {
    %c0 = arith.constant 0 : index
    %c0_0 = arith.constant 0 : index
    %c0_1 = arith.constant 0 : index
    %0 = vector.load %arg2[%c0, %c0_0, %c0_1] : memref<8x16x16xf32, #tpu.memory_space<vmem>>, vector<8x16x16xf32>
    %cst = arith.constant 0.000000e+00 : f32
    %1 = vector.broadcast %cst : f32 to vector<8x16x16xf32>
    %2 = arith.maximumf %0, %1 : vector<8x16x16xf32>
    %c0_2 = arith.constant 0 : index
    %c0_3 = arith.constant 0 : index
    %c0_4 = arith.constant 0 : index
    %3 = vector.load %arg3[%c0_2, %c0_3, %c0_4] : memref<8x16x16xf32, #tpu.memory_space<vmem>>, vector<8x16x16xf32>
    tpu.vector_store %arg3[%c0_2, %c0_3, %c0_4], %2 {strides = array<i32>} : memref<8x16x16xf32, #tpu.memory_space<vmem>>, vector<8x16x16xf32>,
    return
  }
  func.func @transform_0(%arg0: i32, %arg1: i32) -> (i32, i32, i32) {
    %c0_i32 = arith.constant 0 : i32
    %c0_i32_0 = arith.constant 0 : i32
    return %arg0, %arg1, %c0_i32 : i32, i32, i32
  }
  func.func @transform_1(%arg0: i32, %arg1: i32) -> (i32, i32, i32) {
    %c0_i32 = arith.constant 0 : i32
    %c0_i32_0 = arith.constant 0 : i32
    return %arg0, %arg1, %c0_i32 : i32, i32, i32
  }
}

</mosaic_0001>

<llo_original>
// kernel: _relu_impl.1
$region0: #{_relu_impl.1}
  #allocation0 [shape = 'u32[]', space=smem, size = 0x4, offset = 0x4, fixed_abs, tag = 'smem constant byte address 0x4 - core index']
  #allocation1 [shape = 'u32[144,128]{1,0:T(1,128)}', space=vmem, size = 0x12000, scoped, tag = 'internal scratch']
  %s0 = inlined_call_operand.hbm [shape: f32[8,16,16], index: 0, kind: input, shape index: {}, may-alias: {0,1}]
  %s1 = inlined_call_operand.hbm [shape: f32[8,16,16], index: 1, kind: output, shape index: {}, may-alias: {0,1}]
  %s2 = sld [smem:[#allocation0]]
  $region18: #{_relu_impl.1} parent=0
    _
  %s4 = ssub.s32 1, %s2
  %s5 = scalar_select 0, %s4, %s2
  $region1: #{_relu_impl.1} parent=0
    #allocation2 [shape = 'u8[65536]{0}', space=vmem, size = 0x10000, scoped, tag = 'input window, operand 0, single buffered']
    #allocation3 [shape = 's32[1]{0}', space=sflag, size = 0x4, scoped, tag = 'scoped memory for _relu_impl.1']
    #allocation4 [shape = 's32[1]{0}', space=sflag, size = 0x4, scoped, tag = 'scoped memory for _relu_impl.1']
    #allocation5 [shape = 'u8[65536]{0}', space=vmem, size = 0x10000, scoped, tag = 'output window, operand 0, single buffered']
    %6 = vsyncpa [#allocation3], 0
    %7 = vsyncpa [#allocation4], 0
    // Predicated region
    $region2: #{_relu_impl.1} parent=1 // pred_check
      _
    $region3: #{_relu_impl.1} parent=1 // pred_check_branch
      %9 = sbr.rel (0) target = $region5
    $region4: #{_relu_impl.1} parent=1 // pred_region
      %s11 = ssub.s32 2048, 2048
      %12 = vsyncadd [#allocation3], %s11
      %s13 = sshll.u32 [#allocation2], 4
      %s14 = int_to_ptr.vmem [resolvable:$true] %s13
      %19 = dma.hbm_to_vmem [thread:$0]  %s0, 2048, %s14, [#allocation3], 128, 128, 8
    $region5: #{_relu_impl.1} parent=1 // pred_fallthru
      _
    // Predicated region
    $region6: #{_relu_impl.1} parent=1 // pred_check
      _
    $region7: #{_relu_impl.1} parent=1 // pred_check_branch
      %21 = sbr.rel (0) target = $region9
    $region8: #{_relu_impl.1} parent=1 // pred_region
      %22 = dma.done [#allocation3], 2048
    $region9: #{_relu_impl.1} parent=1 // pred_fallthru
      _
    %v23 = vld [vmem:[#allocation2] sm:$0xff]
    %v24 = vld [vmem:[#allocation2 + $0x8] sm:$0xff]
    %v25 = vld [vmem:[#allocation2 + $0x10] sm:$0xff]
    %v26 = vld [vmem:[#allocation2 + $0x18] sm:$0xff]
    %v27 = vld [vmem:[#allocation2 + $0x20] sm:$0xff]
    %v28 = vld [vmem:[#allocation2 + $0x28] sm:$0xff]
    %v29 = vld [vmem:[#allocation2 + $0x30] sm:$0xff]
    %v30 = vld [vmem:[#allocation2 + $0x38] sm:$0xff]
    %v31 = vld [vmem:[#allocation2 + $0x40] sm:$0xff]
    %v32 = vld [vmem:[#allocation2 + $0x48] sm:$0xff]
    %v33 = vld [vmem:[#allocation2 + $0x50] sm:$0xff]
    %v34 = vld [vmem:[#allocation2 + $0x58] sm:$0xff]
    %v35 = vld [vmem:[#allocation2 + $0x60] sm:$0xff]
    %v36 = vld [vmem:[#allocation2 + $0x68] sm:$0xff]
    %v37 = vld [vmem:[#allocation2 + $0x70] sm:$0xff]
    %v38 = vld [vmem:[#allocation2 + $0x78] sm:$0xff]
    %v39 = vmax.f32 %v23, 0.0
    %v40 = vmax.f32 %v24, 0.0
    %v41 = vmax.f32 %v25, 0.0
    %v42 = vmax.f32 %v26, 0.0
    %v43 = vmax.f32 %v27, 0.0
    %v44 = vmax.f32 %v28, 0.0
    %v45 = vmax.f32 %v29, 0.0
    %v46 = vmax.f32 %v30, 0.0
    %v47 = vmax.f32 %v31, 0.0
    %v48 = vmax.f32 %v32, 0.0
    %v49 = vmax.f32 %v33, 0.0
    %v50 = vmax.f32 %v34, 0.0
    %v51 = vmax.f32 %v35, 0.0
    %v52 = vmax.f32 %v36, 0.0
    %v53 = vmax.f32 %v37, 0.0
    %v54 = vmax.f32 %v38, 0.0
    %vm55 = vcmask 130048
    %56 = vst.msk [vmem:[#allocation5] sm:$0xff] %vm55, %v39
    %57 = vst.msk [vmem:[#allocation5 + $0x8] sm:$0xff] %vm55, %v40
    %58 = vst.msk [vmem:[#allocation5 + $0x10] sm:$0xff] %vm55, %v41
    %59 = vst.msk [vmem:[#allocation5 + $0x18] sm:$0xff] %vm55, %v42
    %60 = vst.msk [vmem:[#allocation5 + $0x20] sm:$0xff] %vm55, %v43
    %61 = vst.msk [vmem:[#allocation5 + $0x28] sm:$0xff] %vm55, %v44
    %62 = vst.msk [vmem:[#allocation5 + $0x30] sm:$0xff] %vm55, %v45
    %63 = vst.msk [vmem:[#allocation5 + $0x38] sm:$0xff] %vm55, %v46
    %64 = vst.msk [vmem:[#allocation5 + $0x40] sm:$0xff] %vm55, %v47
    %65 = vst.msk [vmem:[#allocation5 + $0x48] sm:$0xff] %vm55, %v48
    %66 = vst.msk [vmem:[#allocation5 + $0x50] sm:$0xff] %vm55, %v49
    %67 = vst.msk [vmem:[#allocation5 + $0x58] sm:$0xff] %vm55, %v50
    %68 = vst.msk [vmem:[#allocation5 + $0x60] sm:$0xff] %vm55, %v51
    %69 = vst.msk [vmem:[#allocation5 + $0x68] sm:$0xff] %vm55, %v52
    %70 = vst.msk [vmem:[#allocation5 + $0x70] sm:$0xff] %vm55, %v53
    %71 = vst.msk [vmem:[#allocation5 + $0x78] sm:$0xff] %vm55, %v54
    // Predicated region
    $region10: #{_relu_impl.1} parent=1 // pred_check
      _
    $region11: #{_relu_impl.1} parent=1 // pred_check_branch
      %73 = sbr.rel (0) target = $region13
    $region12: #{_relu_impl.1} parent=1 // pred_region
      %s75 = ssub.s32 2048, 2048
      %76 = vsyncadd [#allocation4], %s75
      %s77 = sshll.u32 [#allocation5], 4
      %s78 = int_to_ptr.vmem [resolvable:$true] %s77
      %83 = dma.vmem_to_hbm [thread:$0]  %s78, 2048, %s1, [#allocation4], 128, 128, 8
    $region13: #{_relu_impl.1} parent=1 // pred_fallthru
      _
    // Predicated region
    $region14: #{_relu_impl.1} parent=1 // pred_check
      _
    $region15: #{_relu_impl.1} parent=1 // pred_check_branch
      %85 = sbr.rel (0) target = $region17
    $region16: #{_relu_impl.1} parent=1 // pred_region
      %86 = dma.done [#allocation4], 2048
    $region17: #{_relu_impl.1} parent=1 // pred_fallthru
      _
    %87 = vsyncpa [#allocation3], 1
    %88 = vsyncpa [#allocation4], 1

</llo_original>
